<compile_context>
chip_gen: v5e
topology: v5e:2x2
jax: 0.10.0
libtpu: 0.0.40
codegen_flags: <defaults>
</compile_context>

<pallas_src>
import jax
import jax.numpy as jnp
from jax import lax
from jax.experimental import pallas as pl
from jax.experimental.pallas import tpu as pltpu


def _round_up(x, m):
    return (x + m - 1) // m * m


_VMEM_LIMIT = 32 * 1024 * 1024  # safe on v5e/v6e/v7x, ample for the tiles below


# --------------------------------------------------------------------------
# Phase 2: serial tanh-RNN recurrence over pre-projected inputs.
# --------------------------------------------------------------------------
def _recurrence_kernel(pre_ref, whh_ref, h_ref, h_carry):
    """One (TT, TB, Hp) chunk of h_t = tanh(pre_t + h_{t-1} @ W_hh).

    pre_ref : (TT, TB, Hp) f32   precomputed Lop[x_op]+Lval[x_val]+b
    whh_ref : (Hp, Hp)     bf16  hidden->hidden weight, input-major
    h_ref   : (TT, TB, Hp) f32   hidden-state output
    h_carry : (TB, Hp)     f32   VMEM scratch carrying h across time chunks

    NOTE: correctness relies on (a) the time axis being the last (innermost,
    sequentially iterated) grid axis and (b) megacore sharding only along the
    "parallel" batch axis, so each batch block sees its time chunks in order
    on a single core.  Do not reorder the grid or change dimension_semantics.
    """
    @pl.when(pl.program_id(1) == 0)
    def _():
        h_carry[...] = jnp.zeros_like(h_carry)

    def step(i, h):
        # dot operands in bf16 (MXU-native); add / tanh / stores stay f32.
        pre = pre_ref[i] + jnp.dot(h.astype(jnp.bfloat16), whh_ref[...],
                                   preferred_element_type=jnp.float32)
        h_new = jnp.tanh(pre)
        h_ref[i] = h_new
        return h_new

    # Hidden state lives in vregs across the chunk; scratch touched twice.
    h0 = h_carry[...]
    h_final = lax.fori_loop(0, pre_ref.shape[0], step, h0, unroll=8)
    h_carry[...] = h_final


# --------------------------------------------------------------------------
# Phase 3: fc projection, reading time-major h and writing batch-first logits.
# --------------------------------------------------------------------------
def _fc_kernel(h_ref, w_ref, b_ref, o_ref):
    """h_ref: (TT, TB, Hp) f32 time-major;  w_ref: (Hp, tn) bf16;
    b_ref: (1, tn) f32;  o_ref: (TB, TT, tn) f32 batch-first."""
    for t in range(h_ref.shape[0]):          # static, traced once per t
        y = jnp.dot(h_ref[t].astype(jnp.bfloat16), w_ref[...],
                    preferred_element_type=jnp.float32) + b_ref[...]
        o_ref[:, t, :] = y.astype(o_ref.dtype)


# --------------------------------------------------------------------------
# Full forward pass.
# --------------------------------------------------------------------------
def stack_queue_rnn_forward(x_ops, x_vals, params, *, time_chunk=32):
    embed_op = params["embed_op"]       # (V, H)
    embed_val = params["embed_val"]     # (V, H)
    w_ih = params["w_ih"]               # (H, 2H)  torch layout
    w_hh = params["w_hh"]               # (H, H)
    b_ih = params["b_ih"]               # (H,)
    b_hh = params["b_hh"]               # (H,)
    w_fc = params["w_fc"]               # (V, H)
    b_fc = params["b_fc"]               # (V,)

    B, T = x_ops.shape
    H = embed_op.shape[1]
    V = w_fc.shape[0]

    Hp = _round_up(H, 128)              # lane-dense hidden dim
    Vp = _round_up(V, 128)              # lane-dense vocab dim
    Bp = _round_up(B, 8)                # full sublanes
    TT = min(time_chunk, T)             # time chunk per grid step
    Tp = _round_up(T, TT)               # padded timesteps appended at the end

    # ---- Phase 1 (wrapper): pre-compose embeddings with W_ih ------------
    # Embedding-then-linear is linear, so x_t @ W_ih^T == Lop[x_op] + Lval[x_val].
    lop = embed_op @ w_ih[:, :H].T                           # (V, H) tiny matmul
    lval = embed_val @ w_ih[:, H:].T                         # (V, H) tiny matmul
    lop_p = jnp.zeros((V, Hp), jnp.float32).at[:, :H].set(lop)
    lval_p = jnp.zeros((V, Hp), jnp.float32).at[:, :H].set(lval)
    bias_p = jnp.zeros((Hp,), jnp.float32).at[:H].set(b_ih + b_hh)   # folded bias

    # Row gathers + add, built time-major directly (only tiny int32 index
    # arrays are transposed, never a large float tensor).
    # TODO(synk): fuse this gather into the recurrence kernel via
    # PrefetchScalarGridSpec (indices in SMEM) to skip the HBM `pre` tensor.
    x_ops_tm = jnp.transpose(x_ops)                          # (T, B)
    x_vals_tm = jnp.transpose(x_vals)                        # (T, B)
    pre = lop_p[x_ops_tm] + lval_p[x_vals_tm] + bias_p       # (T, B, Hp)
    pre = jnp.pad(pre, ((0, Tp - T), (0, Bp - B), (0, 0)))   # (Tp, Bp, Hp)

    # Padded, bf16 weights for the MXU (bias / accumulation stay f32).
    whh_p = (jnp.zeros((Hp, Hp), jnp.float32)
             .at[:H, :H].set(w_hh.T).astype(jnp.bfloat16))
    wfc_p = (jnp.zeros((Hp, Vp), jnp.float32)
             .at[:H, :V].set(w_fc.T).astype(jnp.bfloat16))
    bfc_p = jnp.zeros((1, Vp), jnp.float32).at[0, :V].set(b_fc)

    # ---- Phase 2: serial recurrence --------------------------------------
    # Split the batch so the "parallel" axis has >= 2 blocks when possible
    # (lets both v7x TensorCores run the serial phase); then cap the block so
    # each (TT, TB, Hp) f32 block stays <= ~2 MiB (double-buffered in + out
    # blocks fit every chip's scoped-VMEM budget).
    if Bp >= 16 and (Bp // 2) % 8 == 0:
        TB = Bp // 2
    else:
        TB = Bp
    while TB > 8 and TB % 16 == 0 and TT * TB * Hp * 4 > (2 << 20):
        TB //= 2
    nb, nt = Bp // TB, Tp // TT

    h_all = pl.pallas_call(
        _recurrence_kernel,
        out_shape=jax.ShapeDtypeStruct((Tp, Bp, Hp), jnp.float32),
        grid_spec=pltpu.PrefetchScalarGridSpec(
            num_scalar_prefetch=0,
            grid=(nb, nt),
            in_specs=[
                pl.BlockSpec((TT, TB, Hp), lambda b, t: (t, b, 0)),
                pl.BlockSpec((Hp, Hp), lambda b, t: (0, 0)),     # resident
            ],
            out_specs=pl.BlockSpec((TT, TB, Hp), lambda b, t: (t, b, 0)),
            scratch_shapes=[pltpu.VMEM((TB, Hp), jnp.float32)],
        ),
        compiler_params=pltpu.CompilerParams(
            dimension_semantics=("parallel", "arbitrary"),
            vmem_limit_bytes=_VMEM_LIMIT),
    )(pre, whh_p)

    # ---- Phase 3: fc projection, batch-first output ----------------------
    tn = 256 if Vp % 256 == 0 else 128       # wider tiles on 256-wide MXUs
    nv = Vp // tn

    logits = pl.pallas_call(
        _fc_kernel,
        out_shape=jax.ShapeDtypeStruct((Bp, Tp, Vp), jnp.float32),
        grid_spec=pltpu.PrefetchScalarGridSpec(
            num_scalar_prefetch=0,
            grid=(nb, nt, nv),               # vocab innermost: h block reused
            in_specs=[
                pl.BlockSpec((TT, TB, Hp), lambda b, t, j: (t, b, 0)),
                pl.BlockSpec((Hp, tn), lambda b, t, j: (0, j)),
                pl.BlockSpec((1, tn), lambda b, t, j: (0, j)),
            ],
            out_specs=pl.BlockSpec((TB, TT, tn), lambda b, t, j: (b, t, j)),
        ),
        compiler_params=pltpu.CompilerParams(
            dimension_semantics=("parallel", "parallel", "parallel"),
            vmem_limit_bytes=_VMEM_LIMIT),
    )(h_all, wfc_p, bfc_p)

    # Already batch-first; just strip padding.
    return logits[:B, :T, :V]


# --------------------------------------------------------------------------
# Parameters / reference / self-test
# --------------------------------------------------------------------------
def _init_params(key, vocab_size, hidden_size):
    ks = jax.random.split(key, 8)
    H, V = hidden_size, vocab_size
    s = 1.0 / jnp.sqrt(jnp.float32(H))
    return {
        "embed_op": jax.random.normal(ks[0], (V, H), jnp.float32),
        "embed_val": jax.random.normal(ks[1], (V, H), jnp.float32),
        "w_ih": jax.random.uniform(ks[2], (H, 2 * H), jnp.float32, -s, s),
        "w_hh": jax.random.uniform(ks[3], (H, H), jnp.float32, -s, s),
        "b_ih": jax.random.uniform(ks[4], (H,), jnp.float32, -s, s),
        "b_hh": jax.random.uniform(ks[5], (H,), jnp.float32, -s, s),
        "w_fc": jax.random.uniform(ks[6], (V, H), jnp.float32, -s, s),
        "b_fc": jax.random.uniform(ks[7], (V,), jnp.float32, -s, s),
    }


def _reference_forward(x_ops, x_vals, params):
    e = jnp.concatenate(
        [params["embed_op"][x_ops], params["embed_val"][x_vals]], axis=-1)
    B, T, _ = e.shape
    H = params["w_hh"].shape[0]

    def step(h, x_t):
        h_new = jnp.tanh(x_t @ params["w_ih"].T + params["b_ih"]
                         + h @ params["w_hh"].T + params["b_hh"])
        return h_new, h_new

    h0 = jnp.zeros((B, H), jnp.float32)
    _, hs = lax.scan(step, h0, jnp.transpose(e, (1, 0, 2)))   # (T, B, H)
    hs = jnp.transpose(hs, (1, 0, 2))                          # (B, T, H)
    return hs @ params["w_fc"].T + params["b_fc"]


if __name__ == "__main__":
    vocab_size = 16
    hidden_size = 32
    batch = 2
    seq = 8

    key = jax.random.PRNGKey(0)
    k_params, k_ops, k_vals = jax.random.split(key, 3)
    params = _init_params(k_params, vocab_size, hidden_size)

    x_ops = jax.random.randint(k_ops, (batch, seq), 0, vocab_size, jnp.int32)
    x_vals = jax.random.randint(k_vals, (batch, seq), 0, vocab_size, jnp.int32)

    out = stack_queue_rnn_forward(x_ops, x_vals, params)
    out = jax.block_until_ready(out)

    ref = _reference_forward(x_ops, x_vals, params)
    assert out.shape == (batch, seq, vocab_size)
    # bf16 MXU operands (per perf review) -> loosened tolerance vs f32 reference.
    assert jnp.allclose(out, ref, atol=5e-2, rtol=5e-2), (
        float(jnp.max(jnp.abs(out - ref))))

    print("KERNEL_OK")
</pallas_src>

<mosaic_0001>
module attributes {stable_mosaic.version = 11 : i64} {
  func.func @_recurrence_kernel(%arg0: i32, %arg1: i32, %arg2: memref<8x8x128xf32, #tpu.memory_space<vmem>>, %arg3: memref<128x128xbf16, #tpu.memory_space<vmem>>, %arg4: memref<8x8x128xf32, #tpu.memory_space<vmem>>, %arg5: memref<8x128xf32, #tpu.memory_space<vmem>>) attributes {dimension_semantics = [#tpu.dimension_semantics<parallel>, #tpu.dimension_semantics<arbitrary>], iteration_bounds = array<i64: 1, 1>, scalar_prefetch = 0 : i64, scratch_operands = 1 : i64, tpu.core_type = #tpu.core_type<tc>, window_params = [{transform_indices = @transform_0, window_bounds = array<i64: 8, 8, 128>}, {pipeline_mode = #tpu.pipeline_mode<synchronous>, transform_indices = @transform_1, window_bounds = array<i64: 128, 128>}, {transform_indices = @transform_2, window_bounds = array<i64: 8, 8, 128>}]} {
    %c0_i32 = arith.constant 0 : i32
    %0 = arith.cmpi eq, %arg1, %c0_i32 : i32
    %1 = arith.extui %0 : i1 to i32
    %c0_i32_0 = arith.constant 0 : i32
    %2 = arith.cmpi ne, %1, %c0_i32_0 : i32
    scf.if %2 {
      %cst_60 = arith.constant 0.000000e+00 : f32
      %101 = vector.broadcast %cst_60 : f32 to vector<8x128xf32>
      %c0_61 = arith.constant 0 : index
      %c0_62 = arith.constant 0 : index
      %102 = vector.load %arg5[%c0_61, %c0_62] : memref<8x128xf32, #tpu.memory_space<vmem>>, vector<8x128xf32>
      tpu.vector_store %arg5[%c0_61, %c0_62], %101 {strides = array<i32>} : memref<8x128xf32, #tpu.memory_space<vmem>>, vector<8x128xf32>,
    } else {
    }
    %c0 = arith.constant 0 : index
    %c0_1 = arith.constant 0 : index
    %3 = vector.load %arg5[%c0, %c0_1] : memref<8x128xf32, #tpu.memory_space<vmem>>, vector<8x128xf32>
    %c0_i32_2 = arith.constant 0 : i32
    %4 = arith.index_cast %c0_i32_2 : i32 to index
    %c0_3 = arith.constant 0 : index
    %c0_4 = arith.constant 0 : index
    %5 = vector.load %arg2[%4, %c0_3, %c0_4] : memref<8x8x128xf32, #tpu.memory_space<vmem>>, vector<1x8x128xf32>
    %6 = vector.shape_cast %5 : vector<1x8x128xf32> to vector<8x128xf32>
    %7 = arith.truncf %3 : vector<8x128xf32> to vector<8x128xbf16>
    %c0_5 = arith.constant 0 : index
    %c0_6 = arith.constant 0 : index
    %8 = vector.load %arg3[%c0_5, %c0_6] : memref<128x128xbf16, #tpu.memory_space<vmem>>, vector<128x128xbf16>
    %cst = arith.constant dense<0.000000e+00> : vector<8x128xf32>
    %9 = tpu.matmul %7, %8, %cst {dimension_numbers = #tpu.dot_dimension_numbers<[1], [0], [0], [1], [0, 0, 1, 1], [], []>} : vector<8x128xbf16>, vector<128x128xbf16>, vector<8x128xf32> -> vector<8x128xf32>
    %10 = arith.addf %6, %9 : vector<8x128xf32>
    %11 = math.tanh %10 : vector<8x128xf32>
    %12 = arith.index_cast %c0_i32_2 : i32 to index
    %c0_7 = arith.constant 0 : index
    %c0_8 = arith.constant 0 : index
    %13 = vector.load %arg4[%12, %c0_7, %c0_8] : memref<8x8x128xf32, #tpu.memory_space<vmem>>, vector<1x8x128xf32>
    %14 = vector.shape_cast %13 : vector<1x8x128xf32> to vector<8x128xf32>
    %15 = vector.shape_cast %11 : vector<8x128xf32> to vector<1x8x128xf32>
    tpu.vector_store %arg4[%12, %c0_7, %c0_8], %15 {strides = array<i32>} : memref<8x8x128xf32, #tpu.memory_space<vmem>>, vector<1x8x128xf32>,
    %c1_i32 = arith.constant 1 : i32
    %16 = arith.index_cast %c1_i32 : i32 to index
    %c0_9 = arith.constant 0 : index
    %c0_10 = arith.constant 0 : index
    %17 = vector.load %arg2[%16, %c0_9, %c0_10] : memref<8x8x128xf32, #tpu.memory_space<vmem>>, vector<1x8x128xf32>
    %18 = vector.shape_cast %17 : vector<1x8x128xf32> to vector<8x128xf32>
    %19 = arith.truncf %11 : vector<8x128xf32> to vector<8x128xbf16>
    %c0_11 = arith.constant 0 : index
    %c0_12 = arith.constant 0 : index
    %20 = vector.load %arg3[%c0_11, %c0_12] : memref<128x128xbf16, #tpu.memory_space<vmem>>, vector<128x128xbf16>
    %cst_13 = arith.constant dense<0.000000e+00> : vector<8x128xf32>
    %21 = tpu.matmul %19, %20, %cst_13 {dimension_numbers = #tpu.dot_dimension_numbers<[1], [0], [0], [1], [0, 0, 1, 1], [], []>} : vector<8x128xbf16>, vector<128x128xbf16>, vector<8x128xf32> -> vector<8x128xf32>
    %22 = arith.addf %18, %21 : vector<8x128xf32>
    %23 = math.tanh %22 : vector<8x128xf32>
    %24 = arith.index_cast %c1_i32 : i32 to index
    %c0_14 = arith.constant 0 : index
    %c0_15 = arith.constant 0 : index
    %25 = vector.load %arg4[%24, %c0_14, %c0_15] : memref<8x8x128xf32, #tpu.memory_space<vmem>>, vector<1x8x128xf32>
    %26 = vector.shape_cast %25 : vector<1x8x128xf32> to vector<8x128xf32>
    %27 = vector.shape_cast %23 : vector<8x128xf32> to vector<1x8x128xf32>
    tpu.vector_store %arg4[%24, %c0_14, %c0_15], %27 {strides = array<i32>} : memref<8x8x128xf32, #tpu.memory_space<vmem>>, vector<1x8x128xf32>,
    %c2_i32 = arith.constant 2 : i32
    %28 = arith.index_cast %c2_i32 : i32 to index
    %c0_16 = arith.constant 0 : index
    %c0_17 = arith.constant 0 : index
    %29 = vector.load %arg2[%28, %c0_16, %c0_17] : memref<8x8x128xf32, #tpu.memory_space<vmem>>, vector<1x8x128xf32>
    %30 = vector.shape_cast %29 : vector<1x8x128xf32> to vector<8x128xf32>
    %31 = arith.truncf %23 : vector<8x128xf32> to vector<8x128xbf16>
    %c0_18 = arith.constant 0 : index
    %c0_19 = arith.constant 0 : index
    %32 = vector.load %arg3[%c0_18, %c0_19] : memref<128x128xbf16, #tpu.memory_space<vmem>>, vector<128x128xbf16>
    %cst_20 = arith.constant dense<0.000000e+00> : vector<8x128xf32>
    %33 = tpu.matmul %31, %32, %cst_20 {dimension_numbers = #tpu.dot_dimension_numbers<[1], [0], [0], [1], [0, 0, 1, 1], [], []>} : vector<8x128xbf16>, vector<128x128xbf16>, vector<8x128xf32> -> vector<8x128xf32>
    %34 = arith.addf %30, %33 : vector<8x128xf32>
    %35 = math.tanh %34 : vector<8x128xf32>
    %36 = arith.index_cast %c2_i32 : i32 to index
    %c0_21 = arith.constant 0 : index
    %c0_22 = arith.constant 0 : index
    %37 = vector.load %arg4[%36, %c0_21, %c0_22] : memref<8x8x128xf32, #tpu.memory_space<vmem>>, vector<1x8x128xf32>
    %38 = vector.shape_cast %37 : vector<1x8x128xf32> to vector<8x128xf32>
    %39 = vector.shape_cast %35 : vector<8x128xf32> to vector<1x8x128xf32>
    tpu.vector_store %arg4[%36, %c0_21, %c0_22], %39 {strides = array<i32>} : memref<8x8x128xf32, #tpu.memory_space<vmem>>, vector<1x8x128xf32>,
    %c3_i32 = arith.constant 3 : i32
    %40 = arith.index_cast %c3_i32 : i32 to index
    %c0_23 = arith.constant 0 : index
    %c0_24 = arith.constant 0 : index
    %41 = vector.load %arg2[%40, %c0_23, %c0_24] : memref<8x8x128xf32, #tpu.memory_space<vmem>>, vector<1x8x128xf32>
    %42 = vector.shape_cast %41 : vector<1x8x128xf32> to vector<8x128xf32>
    %43 = arith.truncf %35 : vector<8x128xf32> to vector<8x128xbf16>
    %c0_25 = arith.constant 0 : index
    %c0_26 = arith.constant 0 : index
    %44 = vector.load %arg3[%c0_25, %c0_26] : memref<128x128xbf16, #tpu.memory_space<vmem>>, vector<128x128xbf16>
    %cst_27 = arith.constant dense<0.000000e+00> : vector<8x128xf32>
    %45 = tpu.matmul %43, %44, %cst_27 {dimension_numbers = #tpu.dot_dimension_numbers<[1], [0], [0], [1], [0, 0, 1, 1], [], []>} : vector<8x128xbf16>, vector<128x128xbf16>, vector<8x128xf32> -> vector<8x128xf32>
    %46 = arith.addf %42, %45 : vector<8x128xf32>
    %47 = math.tanh %46 : vector<8x128xf32>
    %48 = arith.index_cast %c3_i32 : i32 to index
    %c0_28 = arith.constant 0 : index
    %c0_29 = arith.constant 0 : index
    %49 = vector.load %arg4[%48, %c0_28, %c0_29] : memref<8x8x128xf32, #tpu.memory_space<vmem>>, vector<1x8x128xf32>
    %50 = vector.shape_cast %49 : vector<1x8x128xf32> to vector<8x128xf32>
    %51 = vector.shape_cast %47 : vector<8x128xf32> to vector<1x8x128xf32>
    tpu.vector_store %arg4[%48, %c0_28, %c0_29], %51 {strides = array<i32>} : memref<8x8x128xf32, #tpu.memory_space<vmem>>, vector<1x8x128xf32>,
    %c4_i32 = arith.constant 4 : i32
    %52 = arith.index_cast %c4_i32 : i32 to index
    %c0_30 = arith.constant 0 : index
    %c0_31 = arith.constant 0 : index
    %53 = vector.load %arg2[%52, %c0_30, %c0_31] : memref<8x8x128xf32, #tpu.memory_space<vmem>>, vector<1x8x128xf32>
    %54 = vector.shape_cast %53 : vector<1x8x128xf32> to vector<8x128xf32>
    %55 = arith.truncf %47 : vector<8x128xf32> to vector<8x128xbf16>
    %c0_32 = arith.constant 0 : index
    %c0_33 = arith.constant 0 : index
    %56 = vector.load %arg3[%c0_32, %c0_33] : memref<128x128xbf16, #tpu.memory_space<vmem>>, vector<128x128xbf16>
    %cst_34 = arith.constant dense<0.000000e+00> : vector<8x128xf32>
    %57 = tpu.matmul %55, %56, %cst_34 {dimension_numbers = #tpu.dot_dimension_numbers<[1], [0], [0], [1], [0, 0, 1, 1], [], []>} : vector<8x128xbf16>, vector<128x128xbf16>, vector<8x128xf32> -> vector<8x128xf32>
    %58 = arith.addf %54, %57 : vector<8x128xf32>
    %59 = math.tanh %58 : vector<8x128xf32>
    %60 = arith.index_cast %c4_i32 : i32 to index
    %c0_35 = arith.constant 0 : index
    %c0_36 = arith.constant 0 : index
    %61 = vector.load %arg4[%60, %c0_35, %c0_36] : memref<8x8x128xf32, #tpu.memory_space<vmem>>, vector<1x8x128xf32>
    %62 = vector.shape_cast %61 : vector<1x8x128xf32> to vector<8x128xf32>
    %63 = vector.shape_cast %59 : vector<8x128xf32> to vector<1x8x128xf32>
    tpu.vector_store %arg4[%60, %c0_35, %c0_36], %63 {strides = array<i32>} : memref<8x8x128xf32, #tpu.memory_space<vmem>>, vector<1x8x128xf32>,
    %c5_i32 = arith.constant 5 : i32
    %64 = arith.index_cast %c5_i32 : i32 to index
    %c0_37 = arith.constant 0 : index
    %c0_38 = arith.constant 0 : index
    %65 = vector.load %arg2[%64, %c0_37, %c0_38] : memref<8x8x128xf32, #tpu.memory_space<vmem>>, vector<1x8x128xf32>
    %66 = vector.shape_cast %65 : vector<1x8x128xf32> to vector<8x128xf32>
    %67 = arith.truncf %59 : vector<8x128xf32> to vector<8x128xbf16>
    %c0_39 = arith.constant 0 : index
    %c0_40 = arith.constant 0 : index
    %68 = vector.load %arg3[%c0_39, %c0_40] : memref<128x128xbf16, #tpu.memory_space<vmem>>, vector<128x128xbf16>
    %cst_41 = arith.constant dense<0.000000e+00> : vector<8x128xf32>
    %69 = tpu.matmul %67, %68, %cst_41 {dimension_numbers = #tpu.dot_dimension_numbers<[1], [0], [0], [1], [0, 0, 1, 1], [], []>} : vector<8x128xbf16>, vector<128x128xbf16>, vector<8x128xf32> -> vector<8x128xf32>
    %70 = arith.addf %66, %69 : vector<8x128xf32>
    %71 = math.tanh %70 : vector<8x128xf32>
    %72 = arith.index_cast %c5_i32 : i32 to index
    %c0_42 = arith.constant 0 : index
    %c0_43 = arith.constant 0 : index
    %73 = vector.load %arg4[%72, %c0_42, %c0_43] : memref<8x8x128xf32, #tpu.memory_space<vmem>>, vector<1x8x128xf32>
    %74 = vector.shape_cast %73 : vector<1x8x128xf32> to vector<8x128xf32>
    %75 = vector.shape_cast %71 : vector<8x128xf32> to vector<1x8x128xf32>
    tpu.vector_store %arg4[%72, %c0_42, %c0_43], %75 {strides = array<i32>} : memref<8x8x128xf32, #tpu.memory_space<vmem>>, vector<1x8x128xf32>,
    %c6_i32 = arith.constant 6 : i32
    %76 = arith.index_cast %c6_i32 : i32 to index
    %c0_44 = arith.constant 0 : index
    %c0_45 = arith.constant 0 : index
    %77 = vector.load %arg2[%76, %c0_44, %c0_45] : memref<8x8x128xf32, #tpu.memory_space<vmem>>, vector<1x8x128xf32>
    %78 = vector.shape_cast %77 : vector<1x8x128xf32> to vector<8x128xf32>
    %79 = arith.truncf %71 : vector<8x128xf32> to vector<8x128xbf16>
    %c0_46 = arith.constant 0 : index
    %c0_47 = arith.constant 0 : index
    %80 = vector.load %arg3[%c0_46, %c0_47] : memref<128x128xbf16, #tpu.memory_space<vmem>>, vector<128x128xbf16>
    %cst_48 = arith.constant dense<0.000000e+00> : vector<8x128xf32>
    %81 = tpu.matmul %79, %80, %cst_48 {dimension_numbers = #tpu.dot_dimension_numbers<[1], [0], [0], [1], [0, 0, 1, 1], [], []>} : vector<8x128xbf16>, vector<128x128xbf16>, vector<8x128xf32> -> vector<8x128xf32>
    %82 = arith.addf %78, %81 : vector<8x128xf32>
    %83 = math.tanh %82 : vector<8x128xf32>
    %84 = arith.index_cast %c6_i32 : i32 to index
    %c0_49 = arith.constant 0 : index
    %c0_50 = arith.constant 0 : index
    %85 = vector.load %arg4[%84, %c0_49, %c0_50] : memref<8x8x128xf32, #tpu.memory_space<vmem>>, vector<1x8x128xf32>
    %86 = vector.shape_cast %85 : vector<1x8x128xf32> to vector<8x128xf32>
    %87 = vector.shape_cast %83 : vector<8x128xf32> to vector<1x8x128xf32>
    tpu.vector_store %arg4[%84, %c0_49, %c0_50], %87 {strides = array<i32>} : memref<8x8x128xf32, #tpu.memory_space<vmem>>, vector<1x8x128xf32>,
    %c7_i32 = arith.constant 7 : i32
    %88 = arith.index_cast %c7_i32 : i32 to index
    %c0_51 = arith.constant 0 : index
    %c0_52 = arith.constant 0 : index
    %89 = vector.load %arg2[%88, %c0_51, %c0_52] : memref<8x8x128xf32, #tpu.memory_space<vmem>>, vector<1x8x128xf32>
    %90 = vector.shape_cast %89 : vector<1x8x128xf32> to vector<8x128xf32>
    %91 = arith.truncf %83 : vector<8x128xf32> to vector<8x128xbf16>
    %c0_53 = arith.constant 0 : index
    %c0_54 = arith.constant 0 : index
    %92 = vector.load %arg3[%c0_53, %c0_54] : memref<128x128xbf16, #tpu.memory_space<vmem>>, vector<128x128xbf16>
    %cst_55 = arith.constant dense<0.000000e+00> : vector<8x128xf32>
    %93 = tpu.matmul %91, %92, %cst_55 {dimension_numbers = #tpu.dot_dimension_numbers<[1], [0], [0], [1], [0, 0, 1, 1], [], []>} : vector<8x128xbf16>, vector<128x128xbf16>, vector<8x128xf32> -> vector<8x128xf32>
    %94 = arith.addf %90, %93 : vector<8x128xf32>
    %95 = math.tanh %94 : vector<8x128xf32>
    %96 = arith.index_cast %c7_i32 : i32 to index
    %c0_56 = arith.constant 0 : index
    %c0_57 = arith.constant 0 : index
    %97 = vector.load %arg4[%96, %c0_56, %c0_57] : memref<8x8x128xf32, #tpu.memory_space<vmem>>, vector<1x8x128xf32>
    %98 = vector.shape_cast %97 : vector<1x8x128xf32> to vector<8x128xf32>
    %99 = vector.shape_cast %95 : vector<8x128xf32> to vector<1x8x128xf32>
    tpu.vector_store %arg4[%96, %c0_56, %c0_57], %99 {strides = array<i32>} : memref<8x8x128xf32, #tpu.memory_space<vmem>>, vector<1x8x128xf32>,
    %c8_i32 = arith.constant 8 : i32
    %c0_58 = arith.constant 0 : index
    %c0_59 = arith.constant 0 : index
    %100 = vector.load %arg5[%c0_58, %c0_59] : memref<8x128xf32, #tpu.memory_space<vmem>>, vector<8x128xf32>
    tpu.vector_store %arg5[%c0_58, %c0_59], %95 {strides = array<i32>} : memref<8x128xf32, #tpu.memory_space<vmem>>, vector<8x128xf32>,
    return
  }
  func.func @transform_0(%arg0: i32, %arg1: i32) -> (i32, i32, i32) {
    %c0_i32 = arith.constant 0 : i32
    %c0_i32_0 = arith.constant 0 : i32
    return %arg1, %arg0, %c0_i32 : i32, i32, i32
  }
  func.func @transform_1(%arg0: i32, %arg1: i32) -> (i32, i32) {
    %c0_i32 = arith.constant 0 : i32
    %c0_i32_0 = arith.constant 0 : i32
    %c0_i32_1 = arith.constant 0 : i32
    return %c0_i32, %c0_i32_0 : i32, i32
  }
  func.func @transform_2(%arg0: i32, %arg1: i32) -> (i32, i32, i32) {
    %c0_i32 = arith.constant 0 : i32
    %c0_i32_0 = arith.constant 0 : i32
    return %arg1, %arg0, %c0_i32 : i32, i32, i32
  }
}

</mosaic_0001>

<llo_original>
// kernel: tpu_custom_call.1
$region0: #{tpu_custom_call.1}
  #allocation0 [shape = 'u32[]', space=smem, size = 0x4, offset = 0x4, fixed_abs, tag = 'smem constant byte address 0x4 - core index']
  #allocation1 [shape = 'u32[72,128]{1,0:T(1,128)}', space=vmem, size = 0x9000, scoped, tag = 'internal scratch']
  #allocation2 [shape = 'f32[8,128]{1,0:T(8,128)}', space=vmem, size = 0x1000, scoped, tag = 'scratch operand']
  %s0 = inlined_call_operand.hbm [shape: f32[8,8,128], index: 0, kind: input, shape index: {}]
  %s1 = inlined_call_operand.hbm [shape: bf16[128,128], index: 1, kind: input, shape index: {}]
  %s2 = inlined_call_operand.hbm [shape: f32[8,8,128], index: 2, kind: output, shape index: {}]
  %s3 = sld [smem:[#allocation0]]
  $region30: #{tpu_custom_call.1} parent=0
    _
  %s5 = ssub.s32 1, %s3
  %s6 = scalar_select 0, %s5, %s3
  $region1: #{tpu_custom_call.1} parent=0
    #allocation3 [shape = 'u8[32768]{0}', space=vmem, size = 0x8000, scoped, tag = 'input window, operand 0, single buffered']
    #allocation4 [shape = 's32[1]{0}', space=sflag, size = 0x4, scoped, tag = 'scoped memory for tpu_custom_call.1']
    #allocation5 [shape = 's32[1]{0}', space=sflag, size = 0x4, scoped, tag = 'scoped memory for tpu_custom_call.1']
    #allocation6 [shape = 'u8[32768]{0}', space=vmem, size = 0x8000, scoped, tag = 'input window, operand 1, single buffered']
    #allocation7 [shape = 's32[1]{0}', space=sflag, size = 0x4, scoped, tag = 'scoped memory for tpu_custom_call.1']
    #allocation8 [shape = 'u8[32768]{0}', space=vmem, size = 0x8000, scoped, tag = 'output window, operand 0, single buffered']
    %7 = vsyncpa [#allocation4], 0
    %8 = vsyncpa [#allocation7], 0
    %9 = vsyncpa [#allocation5], 0
    // Predicated region
    $region2: #{tpu_custom_call.1} parent=1 // pred_check
      _
    $region3: #{tpu_custom_call.1} parent=1 // pred_check_branch
      %11 = sbr.rel (0) target = $region5
    $region4: #{tpu_custom_call.1} parent=1 // pred_region
      %13 = vsyncadd [#allocation4], 0
      %s14 = sshll.u32 %s0, 4
      %s15 = int_to_ptr.hbm [resolvable:$true] %s14
      %s16 = sshll.u32 [#allocation3], 4
      %s17 = int_to_ptr.vmem [resolvable:$true] %s16
      %22 = dma.hbm_to_vmem [thread:$0]  %s15, 1024, %s17, [#allocation4], 128, 128, 8
    $region5: #{tpu_custom_call.1} parent=1 // pred_fallthru
      _
    // Predicated region
    $region6: #{tpu_custom_call.1} parent=1 // pred_check
      _
    $region7: #{tpu_custom_call.1} parent=1 // pred_check_branch
      %24 = sbr.rel (0) target = $region9
    $region8: #{tpu_custom_call.1} parent=1 // pred_region
      %26 = vsyncadd [#allocation7], 0
      %s27 = sshll.u32 %s1, 4
      %s28 = int_to_ptr.hbm [resolvable:$true] %s27
      %s29 = sshll.u32 [#allocation6], 4
      %s30 = int_to_ptr.vmem [resolvable:$true] %s29
      %35 = dma.hbm_to_vmem [thread:$0]  %s28, 1024, %s30, [#allocation7], 64, 64, 4
    $region9: #{tpu_custom_call.1} parent=1 // pred_fallthru
      _
    // Predicated region
    $region10: #{tpu_custom_call.1} parent=1 // pred_check
      _
    $region11: #{tpu_custom_call.1} parent=1 // pred_check_branch
      %37 = sbr.rel (0) target = $region13
    $region12: #{tpu_custom_call.1} parent=1 // pred_region
      %39 = dma.done [#allocation4], 1024
    $region13: #{tpu_custom_call.1} parent=1 // pred_fallthru
      _
    // Predicated region
    $region14: #{tpu_custom_call.1} parent=1 // pred_check
      _
    $region15: #{tpu_custom_call.1} parent=1 // pred_check_branch
      %41 = sbr.rel (0) target = $region17
    $region16: #{tpu_custom_call.1} parent=1 // pred_region
      %43 = dma.done [#allocation7], 1024
    $region17: #{tpu_custom_call.1} parent=1 // pred_fallthru
      _
    %p44 = scmp.eq.s32.totalorder 0, 0
    // Predicated region
    $region18: #{tpu_custom_call.1} parent=1 // pred_check
      %p45 = pneg %p44
    $region19: #{tpu_custom_call.1} parent=1 // pred_check_branch
      %47 = sbr.rel (%p45) target = $region21
    $region20: #{tpu_custom_call.1} parent=1 // pred_region
      %48 = vst [vmem:[#allocation2] sm:$0xff] 0.0
    $region21: #{tpu_custom_call.1} parent=1 // pred_fallthru
      _
    %v49 = vld [vmem:[#allocation2] sm:$0xff]
    %v50 = vld [vmem:[#allocation3] sm:$0xff]
    %v51 = vpack.c.bf16 %v49, %v49
    %v52 = vld [vmem:[#allocation6] sm:$0xf]
    %v53 = vld [vmem:[#allocation6 + $0x4] sm:$0xf]
    %v54 = vld [vmem:[#allocation6 + $0x8] sm:$0xf]
    %v55 = vld [vmem:[#allocation6 + $0xc] sm:$0xf]
    %v56 = vld [vmem:[#allocation6 + $0x10] sm:$0xf]
    %v57 = vld [vmem:[#allocation6 + $0x14] sm:$0xf]
    %v58 = vld [vmem:[#allocation6 + $0x18] sm:$0xf]
    %v59 = vld [vmem:[#allocation6 + $0x1c] sm:$0xf]
    %v60 = vld [vmem:[#allocation6 + $0x20] sm:$0xf]
    %v61 = vld [vmem:[#allocation6 + $0x24] sm:$0xf]
    %v62 = vld [vmem:[#allocation6 + $0x28] sm:$0xf]
    %v63 = vld [vmem:[#allocation6 + $0x2c] sm:$0xf]
    %v64 = vld [vmem:[#allocation6 + $0x30] sm:$0xf]
    %v65 = vld [vmem:[#allocation6 + $0x34] sm:$0xf]
    %v66 = vld [vmem:[#allocation6 + $0x38] sm:$0xf]
    %v67 = vld [vmem:[#allocation6 + $0x3c] sm:$0xf]
    %v84 = vunpack.c.l.b16 %v52
    %v85 = vunpack.c.l.b16 %v53
    %v86 = vunpack.c.l.b16 %v54
    %v87 = vunpack.c.l.b16 %v55
    %v88 = vunpack.c.l.b16 %v56
    %v89 = vunpack.c.l.b16 %v57
    %v90 = vunpack.c.l.b16 %v58
    %v91 = vunpack.c.l.b16 %v59
    %v92 = vunpack.c.l.b16 %v60
    %v93 = vunpack.c.l.b16 %v61
    %v94 = vunpack.c.l.b16 %v62
    %v95 = vunpack.c.l.b16 %v63
    %v96 = vunpack.c.l.b16 %v64
    %v97 = vunpack.c.l.b16 %v65
    %v98 = vunpack.c.l.b16 %v66
    %v99 = vunpack.c.l.b16 %v67
    %v100 = vpack.c.b16 %v85, %v84
    %v101 = vpack.c.b16 %v87, %v86
    %v102 = vpack.c.b16 %v89, %v88
    %v103 = vpack.c.b16 %v91, %v90
    %v104 = vpack.c.b16 %v93, %v92
    %v105 = vpack.c.b16 %v95, %v94
    %v106 = vpack.c.b16 %v97, %v96
    %v107 = vpack.c.b16 %v99, %v98
    %116 = vmatpush.bf16.msra.mxu0 %v107
    %117 = vmatpush.bf16.msra.mxu0 %v106
    %118 = vmatpush.bf16.msra.mxu0 %v105
    %119 = vmatpush.bf16.msra.mxu0 %v104
    %120 = vmatpush.bf16.msra.mxu0 %v103
    %121 = vmatpush.bf16.msra.mxu0 %v102
    %122 = vmatpush.bf16.msra.mxu0 %v101
    %123 = vmatpush.bf16.msra.mxu0 %v100
    %124 = vmatmul.bf16.gmra.mxu0 %v51
    %v125 = vpop.f32.mrf.mxu0
    %v126 = vadd.f32 0.0, %v125
    %v127 = vpop.f32.mrf.mxu0
    %128 = vdwg.mxu0
    %v129 = vadd.f32 %v50, %v126
    %v130 = vtanh.pop %v129
    %131 = vst [vmem:[#allocation8] sm:$0xff] %v130
    %s132 = scalar_lea.vmem [#allocation3], 8
    %v133 = vld [vmem:[%s132] sm:$0xff]
    %v134 = vpack.c.bf16 %v130, %v130
    %v135 = vld [vmem:[#allocation6] sm:$0xf]
    %v136 = vld [vmem:[#allocation6 + $0x4] sm:$0xf]
    %v137 = vld [vmem:[#allocation6 + $0x8] sm:$0xf]
    %v138 = vld [vmem:[#allocation6 + $0xc] sm:$0xf]
    %v139 = vld [vmem:[#allocation6 + $0x10] sm:$0xf]
    %v140 = vld [vmem:[#allocation6 + $0x14] sm:$0xf]
    %v141 = vld [vmem:[#allocation6 + $0x18] sm:$0xf]
    %v142 = vld [vmem:[#allocation6 + $0x1c] sm:$0xf]
    %v143 = vld [vmem:[#allocation6 + $0x20] sm:$0xf]
    %v144 = vld [vmem:[#allocation6 + $0x24] sm:$0xf]
    %v145 = vld [vmem:[#allocation6 + $0x28] sm:$0xf]
    %v146 = vld [vmem:[#allocation6 + $0x2c] sm:$0xf]
    %v147 = vld [vmem:[#allocation6 + $0x30] sm:$0xf]
    %v148 = vld [vmem:[#allocation6 + $0x34] sm:$0xf]
    %v149 = vld [vmem:[#allocation6 + $0x38] sm:$0xf]
    %v150 = vld [vmem:[#allocation6 + $0x3c] sm:$0xf]
    %v167 = vunpack.c.l.b16 %v135
    %v168 = vunpack.c.l.b16 %v136
    %v169 = vunpack.c.l.b16 %v137
    %v170 = vunpack.c.l.b16 %v138
    %v171 = vunpack.c.l.b16 %v139
    %v172 = vunpack.c.l.b16 %v140
    %v173 = vunpack.c.l.b16 %v141
    %v174 = vunpack.c.l.b16 %v142
    %v175 = vunpack.c.l.b16 %v143
    %v176 = vunpack.c.l.b16 %v144
    %v177 = vunpack.c.l.b16 %v145
    %v178 = vunpack.c.l.b16 %v146
    %v179 = vunpack.c.l.b16 %v147
    %v180 = vunpack.c.l.b16 %v148
    %v181 = vunpack.c.l.b16 %v149
    %v182 = vunpack.c.l.b16 %v150
    %v183 = vpack.c.b16 %v168, %v167
    %v184 = vpack.c.b16 %v170, %v169
    %v185 = vpack.c.b16 %v172, %v171
    %v186 = vpack.c.b16 %v174, %v173
    %v187 = vpack.c.b16 %v176, %v175
    %v188 = vpack.c.b16 %v178, %v177
    %v189 = vpack.c.b16 %v180, %v179
    %v190 = vpack.c.b16 %v182, %v181
    %199 = vmatpush.bf16.msra.mxu0 %v190
    %200 = vmatpush.bf16.msra.mxu0 %v189
    %201 = vmatpush.bf16.msra.mxu0 %v188
    %202 = vmatpush.bf16.msra.mxu0 %v187
    %203 = vmatpush.bf16.msra.mxu0 %v186
    %204 = vmatpush.bf16.msra.mxu0 %v185
    %205 = vmatpush.bf16.msra.mxu0 %v184
    %206 = vmatpush.bf16.msra.mxu0 %v183
    %207 = vmatmul.bf16.gmra.mxu0 %v134
    %v208 = vpop.f32.mrf.mxu0
    %v209 = vadd.f32 0.0, %v208
    %v210 = vpop.f32.mrf.mxu0
    %211 = vdwg.mxu0
    %v212 = vadd.f32 %v133, %v209
    %v213 = vtanh.pop %v212
    %s214 = scalar_lea.vmem [#allocation8], 8
    %215 = vst [vmem:[%s214] sm:$0xff] %v213
    %s216 = scalar_lea.vmem [#allocation3], 16
    %v217 = vld [vmem:[%s216] sm:$0xff]
    %v218 = vpack.c.bf16 %v213, %v213
    %v219 = vld [vmem:[#allocation6] sm:$0xf]
    %v220 = vld [vmem:[#allocation6 + $0x4] sm:$0xf]
    %v221 = vld [vmem:[#allocation6 + $0x8] sm:$0xf]
    %v222 = vld [vmem:[#allocation6 + $0xc] sm:$0xf]
    %v223 = vld [vmem:[#allocation6 + $0x10] sm:$0xf]
    %v224 = vld [vmem:[#allocation6 + $0x14] sm:$0xf]
    %v225 = vld [vmem:[#allocation6 + $0x18] sm:$0xf]
    %v226 = vld [vmem:[#allocation6 + $0x1c] sm:$0xf]
    %v227 = vld [vmem:[#allocation6 + $0x20] sm:$0xf]
    %v228 = vld [vmem:[#allocation6 + $0x24] sm:$0xf]
    %v229 = vld [vmem:[#allocation6 + $0x28] sm:$0xf]
    %v230 = vld [vmem:[#allocation6 + $0x2c] sm:$0xf]
    %v231 = vld [vmem:[#allocation6 + $0x30] sm:$0xf]
    %v232 = vld [vmem:[#allocation6 + $0x34] sm:$0xf]
    %v233 = vld [vmem:[#allocation6 + $0x38] sm:$0xf]
    %v234 = vld [vmem:[#allocation6 + $0x3c] sm:$0xf]
    %v251 = vunpack.c.l.b16 %v219
    %v252 = vunpack.c.l.b16 %v220
    %v253 = vunpack.c.l.b16 %v221
    %v254 = vunpack.c.l.b16 %v222
    %v255 = vunpack.c.l.b16 %v223
    %v256 = vunpack.c.l.b16 %v224
    %v257 = vunpack.c.l.b16 %v225
    %v258 = vunpack.c.l.b16 %v226
    %v259 = vunpack.c.l.b16 %v227
    %v260 = vunpack.c.l.b16 %v228
    %v261 = vunpack.c.l.b16 %v229
    %v262 = vunpack.c.l.b16 %v230
    %v263 = vunpack.c.l.b16 %v231
    %v264 = vunpack.c.l.b16 %v232
    %v265 = vunpack.c.l.b16 %v233
    %v266 = vunpack.c.l.b16 %v234
    %v267 = vpack.c.b16 %v252, %v251
    %v268 = vpack.c.b16 %v254, %v253
    %v269 = vpack.c.b16 %v256, %v255
    %v270 = vpack.c.b16 %v258, %v257
    %v271 = vpack.c.b16 %v260, %v259
    %v272 = vpack.c.b16 %v262, %v261
    %v273 = vpack.c.b16 %v264, %v263
    %v274 = vpack.c.b16 %v266, %v265
    %283 = vmatpush.bf16.msra.mxu0 %v274
    %284 = vmatpush.bf16.msra.mxu0 %v273
    %285 = vmatpush.bf16.msra.mxu0 %v272
    %286 = vmatpush.bf16.msra.mxu0 %v271
    %287 = vmatpush.bf16.msra.mxu0 %v270
    %288 = vmatpush.bf16.msra.mxu0 %v269
    %289 = vmatpush.bf16.msra.mxu0 %v268
    %290 = vmatpush.bf16.msra.mxu0 %v267
    %291 = vmatmul.bf16.gmra.mxu0 %v218
    %v292 = vpop.f32.mrf.mxu0
    %v293 = vadd.f32 0.0, %v292
    %v294 = vpop.f32.mrf.mxu0
    %295 = vdwg.mxu0
    %v296 = vadd.f32 %v217, %v293
    %v297 = vtanh.pop %v296
    %s298 = scalar_lea.vmem [#allocation8], 16
    %299 = vst [vmem:[%s298] sm:$0xff] %v297
    %s300 = scalar_lea.vmem [#allocation3], 24
    %v301 = vld [vmem:[%s300] sm:$0xff]
    %v302 = vpack.c.bf16 %v297, %v297
    %v303 = vld [vmem:[#allocation6] sm:$0xf]
    %v304 = vld [vmem:[#allocation6 + $0x4] sm:$0xf]
    %v305 = vld [vmem:[#allocation6 + $0x8] sm:$0xf]
    %v306 = vld [vmem:[#allocation6 + $0xc] sm:$0xf]
    %v307 = vld [vmem:[#allocation6 + $0x10] sm:$0xf]
    %v308 = vld [vmem:[#allocation6 + $0x14] sm:$0xf]
    %v309 = vld [vmem:[#allocation6 + $0x18] sm:$0xf]
    %v310 = vld [vmem:[#allocation6 + $0x1c] sm:$0xf]
    %v311 = vld [vmem:[#allocation6 + $0x20] sm:$0xf]
    %v312 = vld [vmem:[#allocation6 + $0x24] sm:$0xf]
    %v313 = vld [vmem:[#allocation6 + $0x28] sm:$0xf]
    %v314 = vld [vmem:[#allocation6 + $0x2c] sm:$0xf]
    %v315 = vld [vmem:[#allocation6 + $0x30] sm:$0xf]
    %v316 = vld [vmem:[#allocation6 + $0x34] sm:$0xf]
    %v317 = vld [vmem:[#allocation6 + $0x38] sm:$0xf]
    %v318 = vld [vmem:[#allocation6 + $0x3c] sm:$0xf]
    %v335 = vunpack.c.l.b16 %v303
    %v336 = vunpack.c.l.b16 %v304
    %v337 = vunpack.c.l.b16 %v305
    %v338 = vunpack.c.l.b16 %v306
    %v339 = vunpack.c.l.b16 %v307
    %v340 = vunpack.c.l.b16 %v308
    %v341 = vunpack.c.l.b16 %v309
    %v342 = vunpack.c.l.b16 %v310
    %v343 = vunpack.c.l.b16 %v311
    %v344 = vunpack.c.l.b16 %v312
    %v345 = vunpack.c.l.b16 %v313
    %v346 = vunpack.c.l.b16 %v314
    %v347 = vunpack.c.l.b16 %v315
    %v348 = vunpack.c.l.b16 %v316
    %v349 = vunpack.c.l.b16 %v317
    %v350 = vunpack.c.l.b16 %v318
    %v351 = vpack.c.b16 %v336, %v335
    %v352 = vpack.c.b16 %v338, %v337
    %v353 = vpack.c.b16 %v340, %v339
    %v354 = vpack.c.b16 %v342, %v341
    %v355 = vpack.c.b16 %v344, %v343
    %v356 = vpack.c.b16 %v346, %v345
    %v357 = vpack.c.b16 %v348, %v347
    %v358 = vpack.c.b16 %v350, %v349
    %367 = vmatpush.bf16.msra.mxu0 %v358
    %368 = vmatpush.bf16.msra.mxu0 %v357
    %369 = vmatpush.bf16.msra.mxu0 %v356
    %370 = vmatpush.bf16.msra.mxu0 %v355
    %371 = vmatpush.bf16.msra.mxu0 %v354
    %372 = vmatpush.bf16.msra.mxu0 %v353
    %373 = vmatpush.bf16.msra.mxu0 %v352
    %374 = vmatpush.bf16.msra.mxu0 %v351
    %375 = vmatmul.bf16.gmra.mxu0 %v302
    %v376 = vpop.f32.mrf.mxu0
    %v377 = vadd.f32 0.0, %v376
    %v378 = vpop.f32.mrf.mxu0
    %379 = vdwg.mxu0
    %v380 = vadd.f32 %v301, %v377
    %v381 = vtanh.pop %v380
    %s382 = scalar_lea.vmem [#allocation8], 24
    %383 = vst [vmem:[%s382] sm:$0xff] %v381
    %s384 = scalar_lea.vmem [#allocation3], 32
    %v385 = vld [vmem:[%s384] sm:$0xff]
    %v386 = vpack.c.bf16 %v381, %v381
    %v387 = vld [vmem:[#allocation6] sm:$0xf]
    %v388 = vld [vmem:[#allocation6 + $0x4] sm:$0xf]
    %v389 = vld [vmem:[#allocation6 + $0x8] sm:$0xf]
    %v390 = vld [vmem:[#allocation6 + $0xc] sm:$0xf]
    %v391 = vld [vmem:[#allocation6 + $0x10] sm:$0xf]
    %v392 = vld [vmem:[#allocation6 + $0x14] sm:$0xf]
    %v393 = vld [vmem:[#allocation6 + $0x18] sm:$0xf]
    %v394 = vld [vmem:[#allocation6 + $0x1c] sm:$0xf]
    %v395 = vld [vmem:[#allocation6 + $0x20] sm:$0xf]
    %v396 = vld [vmem:[#allocation6 + $0x24] sm:$0xf]
    %v397 = vld [vmem:[#allocation6 + $0x28] sm:$0xf]
    %v398 = vld [vmem:[#allocation6 + $0x2c] sm:$0xf]
    %v399 = vld [vmem:[#allocation6 + $0x30] sm:$0xf]
    %v400 = vld [vmem:[#allocation6 + $0x34] sm:$0xf]
    %v401 = vld [vmem:[#allocation6 + $0x38] sm:$0xf]
    %v402 = vld [vmem:[#allocation6 + $0x3c] sm:$0xf]
    %v419 = vunpack.c.l.b16 %v387
    %v420 = vunpack.c.l.b16 %v388
    %v421 = vunpack.c.l.b16 %v389
    %v422 = vunpack.c.l.b16 %v390
    %v423 = vunpack.c.l.b16 %v391
    %v424 = vunpack.c.l.b16 %v392
    %v425 = vunpack.c.l.b16 %v393
    %v426 = vunpack.c.l.b16 %v394
    %v427 = vunpack.c.l.b16 %v395
    %v428 = vunpack.c.l.b16 %v396
    %v429 = vunpack.c.l.b16 %v397
    %v430 = vunpack.c.l.b16 %v398
    %v431 = vunpack.c.l.b16 %v399
    %v432 = vunpack.c.l.b16 %v400
    %v433 = vunpack.c.l.b16 %v401
    %v434 = vunpack.c.l.b16 %v402
    %v435 = vpack.c.b16 %v420, %v419
    %v436 = vpack.c.b16 %v422, %v421
    %v437 = vpack.c.b16 %v424, %v423
    %v438 = vpack.c.b16 %v426, %v425
    %v439 = vpack.c.b16 %v428, %v427
    %v440 = vpack.c.b16 %v430, %v429
    %v441 = vpack.c.b16 %v432, %v431
    %v442 = vpack.c.b16 %v434, %v433
    %451 = vmatpush.bf16.msra.mxu0 %v442
    %452 = vmatpush.bf16.msra.mxu0 %v441
    %453 = vmatpush.bf16.msra.mxu0 %v440
    %454 = vmatpush.bf16.msra.mxu0 %v439
    %455 = vmatpush.bf16.msra.mxu0 %v438
    %456 = vmatpush.bf16.msra.mxu0 %v437
    %457 = vmatpush.bf16.msra.mxu0 %v436
    %458 = vmatpush.bf16.msra.mxu0 %v435
    %459 = vmatmul.bf16.gmra.mxu0 %v386
    %v460 = vpop.f32.mrf.mxu0
    %v461 = vadd.f32 0.0, %v460
    %v462 = vpop.f32.mrf.mxu0
    %463 = vdwg.mxu0
    %v464 = vadd.f32 %v385, %v461
    %v465 = vtanh.pop %v464
    %s466 = scalar_lea.vmem [#allocation8], 32
    %467 = vst [vmem:[%s466] sm:$0xff] %v465
    %s468 = scalar_lea.vmem [#allocation3], 40
    %v469 = vld [vmem:[%s468] sm:$0xff]
    %v470 = vpack.c.bf16 %v465, %v465
    %v471 = vld [vmem:[#allocation6] sm:$0xf]
    %v472 = vld [vmem:[#allocation6 + $0x4] sm:$0xf]
    %v473 = vld [vmem:[#allocation6 + $0x8] sm:$0xf]
    %v474 = vld [vmem:[#allocation6 + $0xc] sm:$0xf]
    %v475 = vld [vmem:[#allocation6 + $0x10] sm:$0xf]
    %v476 = vld [vmem:[#allocation6 + $0x14] sm:$0xf]
    %v477 = vld [vmem:[#allocation6 + $0x18] sm:$0xf]
    %v478 = vld [vmem:[#allocation6 + $0x1c] sm:$0xf]
    %v479 = vld [vmem:[#allocation6 + $0x20] sm:$0xf]
    %v480 = vld [vmem:[#allocation6 + $0x24] sm:$0xf]
    %v481 = vld [vmem:[#allocation6 + $0x28] sm:$0xf]
    %v482 = vld [vmem:[#allocation6 + $0x2c] sm:$0xf]
    %v483 = vld [vmem:[#allocation6 + $0x30] sm:$0xf]
    %v484 = vld [vmem:[#allocation6 + $0x34] sm:$0xf]
    %v485 = vld [vmem:[#allocation6 + $0x38] sm:$0xf]
    %v486 = vld [vmem:[#allocation6 + $0x3c] sm:$0xf]
    %v503 = vunpack.c.l.b16 %v471
    %v504 = vunpack.c.l.b16 %v472
    %v505 = vunpack.c.l.b16 %v473
    %v506 = vunpack.c.l.b16 %v474
    %v507 = vunpack.c.l.b16 %v475
    %v508 = vunpack.c.l.b16 %v476
    %v509 = vunpack.c.l.b16 %v477
    %v510 = vunpack.c.l.b16 %v478
    %v511 = vunpack.c.l.b16 %v479
    %v512 = vunpack.c.l.b16 %v480
    %v513 = vunpack.c.l.b16 %v481
    %v514 = vunpack.c.l.b16 %v482
    %v515 = vunpack.c.l.b16 %v483
    %v516 = vunpack.c.l.b16 %v484
    %v517 = vunpack.c.l.b16 %v485
    %v518 = vunpack.c.l.b16 %v486
    %v519 = vpack.c.b16 %v504, %v503
    %v520 = vpack.c.b16 %v506, %v505
    %v521 = vpack.c.b16 %v508, %v507
    %v522 = vpack.c.b16 %v510, %v509
    %v523 = vpack.c.b16 %v512, %v511
    %v524 = vpack.c.b16 %v514, %v513
    %v525 = vpack.c.b16 %v516, %v515
    %v526 = vpack.c.b16 %v518, %v517
    %535 = vmatpush.bf16.msra.mxu0 %v526
    %536 = vmatpush.bf16.msra.mxu0 %v525
    %537 = vmatpush.bf16.msra.mxu0 %v524
    %538 = vmatpush.bf16.msra.mxu0 %v523
    %539 = vmatpush.bf16.msra.mxu0 %v522
    %540 = vmatpush.bf16.msra.mxu0 %v521
    %541 = vmatpush.bf16.msra.mxu0 %v520
    %542 = vmatpush.bf16.msra.mxu0 %v519
    %543 = vmatmul.bf16.gmra.mxu0 %v470
    %v544 = vpop.f32.mrf.mxu0
    %v545 = vadd.f32 0.0, %v544
    %v546 = vpop.f32.mrf.mxu0
    %547 = vdwg.mxu0
    %v548 = vadd.f32 %v469, %v545
    %v549 = vtanh.pop %v548
    %s550 = scalar_lea.vmem [#allocation8], 40
    %551 = vst [vmem:[%s550] sm:$0xff] %v549
    %s552 = scalar_lea.vmem [#allocation3], 48
    %v553 = vld [vmem:[%s552] sm:$0xff]
    %v554 = vpack.c.bf16 %v549, %v549
    %v555 = vld [vmem:[#allocation6] sm:$0xf]
    %v556 = vld [vmem:[#allocation6 + $0x4] sm:$0xf]
    %v557 = vld [vmem:[#allocation6 + $0x8] sm:$0xf]
    %v558 = vld [vmem:[#allocation6 + $0xc] sm:$0xf]
    %v559 = vld [vmem:[#allocation6 + $0x10] sm:$0xf]
    %v560 = vld [vmem:[#allocation6 + $0x14] sm:$0xf]
    %v561 = vld [vmem:[#allocation6 + $0x18] sm:$0xf]
    %v562 = vld [vmem:[#allocation6 + $0x1c] sm:$0xf]
    %v563 = vld [vmem:[#allocation6 + $0x20] sm:$0xf]
    %v564 = vld [vmem:[#allocation6 + $0x24] sm:$0xf]
    %v565 = vld [vmem:[#allocation6 + $0x28] sm:$0xf]
    %v566 = vld [vmem:[#allocation6 + $0x2c] sm:$0xf]
    %v567 = vld [vmem:[#allocation6 + $0x30] sm:$0xf]
    %v568 = vld [vmem:[#allocation6 + $0x34] sm:$0xf]
    %v569 = vld [vmem:[#allocation6 + $0x38] sm:$0xf]
    %v570 = vld [vmem:[#allocation6 + $0x3c] sm:$0xf]
    %v587 = vunpack.c.l.b16 %v555
    %v588 = vunpack.c.l.b16 %v556
    %v589 = vunpack.c.l.b16 %v557
    %v590 = vunpack.c.l.b16 %v558
    %v591 = vunpack.c.l.b16 %v559
    %v592 = vunpack.c.l.b16 %v560
    %v593 = vunpack.c.l.b16 %v561
    %v594 = vunpack.c.l.b16 %v562
    %v595 = vunpack.c.l.b16 %v563
    %v596 = vunpack.c.l.b16 %v564
    %v597 = vunpack.c.l.b16 %v565
    %v598 = vunpack.c.l.b16 %v566
    %v599 = vunpack.c.l.b16 %v567
    %v600 = vunpack.c.l.b16 %v568
    %v601 = vunpack.c.l.b16 %v569
    %v602 = vunpack.c.l.b16 %v570
    %v603 = vpack.c.b16 %v588, %v587
    %v604 = vpack.c.b16 %v590, %v589
    %v605 = vpack.c.b16 %v592, %v591
    %v606 = vpack.c.b16 %v594, %v593
    %v607 = vpack.c.b16 %v596, %v595
    %v608 = vpack.c.b16 %v598, %v597
    %v609 = vpack.c.b16 %v600, %v599
    %v610 = vpack.c.b16 %v602, %v601
    %619 = vmatpush.bf16.msra.mxu0 %v610
    %620 = vmatpush.bf16.msra.mxu0 %v609
    %621 = vmatpush.bf16.msra.mxu0 %v608
    %622 = vmatpush.bf16.msra.mxu0 %v607
    %623 = vmatpush.bf16.msra.mxu0 %v606
    %624 = vmatpush.bf16.msra.mxu0 %v605
    %625 = vmatpush.bf16.msra.mxu0 %v604
    %626 = vmatpush.bf16.msra.mxu0 %v603
    %627 = vmatmul.bf16.gmra.mxu0 %v554
    %v628 = vpop.f32.mrf.mxu0
    %v629 = vadd.f32 0.0, %v628
    %v630 = vpop.f32.mrf.mxu0
    %631 = vdwg.mxu0
    %v632 = vadd.f32 %v553, %v629
    %v633 = vtanh.pop %v632
    %s634 = scalar_lea.vmem [#allocation8], 48
    %635 = vst [vmem:[%s634] sm:$0xff] %v633
    %s636 = scalar_lea.vmem [#allocation3], 56
    %v637 = vld [vmem:[%s636] sm:$0xff]
    %v638 = vpack.c.bf16 %v633, %v633
    %v639 = vld [vmem:[#allocation6] sm:$0xf]
    %v640 = vld [vmem:[#allocation6 + $0x4] sm:$0xf]
    %v641 = vld [vmem:[#allocation6 + $0x8] sm:$0xf]
    %v642 = vld [vmem:[#allocation6 + $0xc] sm:$0xf]
    %v643 = vld [vmem:[#allocation6 + $0x10] sm:$0xf]
    %v644 = vld [vmem:[#allocation6 + $0x14] sm:$0xf]
    %v645 = vld [vmem:[#allocation6 + $0x18] sm:$0xf]
    %v646 = vld [vmem:[#allocation6 + $0x1c] sm:$0xf]
    %v647 = vld [vmem:[#allocation6 + $0x20] sm:$0xf]
    %v648 = vld [vmem:[#allocation6 + $0x24] sm:$0xf]
    %v649 = vld [vmem:[#allocation6 + $0x28] sm:$0xf]
    %v650 = vld [vmem:[#allocation6 + $0x2c] sm:$0xf]
    %v651 = vld [vmem:[#allocation6 + $0x30] sm:$0xf]
    %v652 = vld [vmem:[#allocation6 + $0x34] sm:$0xf]
    %v653 = vld [vmem:[#allocation6 + $0x38] sm:$0xf]
    %v654 = vld [vmem:[#allocation6 + $0x3c] sm:$0xf]
    %v671 = vunpack.c.l.b16 %v639
    %v672 = vunpack.c.l.b16 %v640
    %v673 = vunpack.c.l.b16 %v641
    %v674 = vunpack.c.l.b16 %v642
    %v675 = vunpack.c.l.b16 %v643
    %v676 = vunpack.c.l.b16 %v644
    %v677 = vunpack.c.l.b16 %v645
    %v678 = vunpack.c.l.b16 %v646
    %v679 = vunpack.c.l.b16 %v647
    %v680 = vunpack.c.l.b16 %v648
    %v681 = vunpack.c.l.b16 %v649
    %v682 = vunpack.c.l.b16 %v650
    %v683 = vunpack.c.l.b16 %v651
    %v684 = vunpack.c.l.b16 %v652
    %v685 = vunpack.c.l.b16 %v653
    %v686 = vunpack.c.l.b16 %v654
    %v687 = vpack.c.b16 %v672, %v671
    %v688 = vpack.c.b16 %v674, %v673
    %v689 = vpack.c.b16 %v676, %v675
    %v690 = vpack.c.b16 %v678, %v677
    %v691 = vpack.c.b16 %v680, %v679
    %v692 = vpack.c.b16 %v682, %v681
    %v693 = vpack.c.b16 %v684, %v683
    %v694 = vpack.c.b16 %v686, %v685
    %703 = vmatpush.bf16.msra.mxu0 %v694
    %704 = vmatpush.bf16.msra.mxu0 %v693
    %705 = vmatpush.bf16.msra.mxu0 %v692
    %706 = vmatpush.bf16.msra.mxu0 %v691
    %707 = vmatpush.bf16.msra.mxu0 %v690
    %708 = vmatpush.bf16.msra.mxu0 %v689
    %709 = vmatpush.bf16.msra.mxu0 %v688
    %710 = vmatpush.bf16.msra.mxu0 %v687
    %711 = vmatmul.bf16.gmra.mxu0 %v638
    %v712 = vpop.f32.mrf.mxu0
    %v713 = vadd.f32 0.0, %v712
    %v714 = vpop.f32.mrf.mxu0
    %715 = vdwg.mxu0
    %v716 = vadd.f32 %v637, %v713
    %v717 = vtanh.pop %v716
    %s718 = scalar_lea.vmem [#allocation8], 56
    %719 = vst [vmem:[%s718] sm:$0xff] %v717
    %720 = vst [vmem:[#allocation2] sm:$0xff] %v717
    // Predicated region
    $region22: #{tpu_custom_call.1} parent=1 // pred_check
      _
    $region23: #{tpu_custom_call.1} parent=1 // pred_check_branch
      %722 = sbr.rel (0) target = $region25
    $region24: #{tpu_custom_call.1} parent=1 // pred_region
      %724 = vsyncadd [#allocation5], 0
      %s725 = sshll.u32 [#allocation8], 4
      %s726 = int_to_ptr.vmem [resolvable:$true] %s725
      %s727 = sshll.u32 %s2, 4
      %s728 = int_to_ptr.hbm [resolvable:$true] %s727
      %733 = dma.vmem_to_hbm [thread:$0]  %s726, 1024, %s728, [#allocation5], 128, 128, 8
    $region25: #{tpu_custom_call.1} parent=1 // pred_fallthru
      _
    // Predicated region
    $region26: #{tpu_custom_call.1} parent=1 // pred_check
      _
    $region27: #{tpu_custom_call.1} parent=1 // pred_check_branch
      %735 = sbr.rel (0) target = $region29
    $region28: #{tpu_custom_call.1} parent=1 // pred_region
      %737 = dma.done [#allocation5], 1024
    $region29: #{tpu_custom_call.1} parent=1 // pred_fallthru
      _
    %738 = vsyncpa [#allocation4], 1
    %739 = vsyncpa [#allocation7], 1
    %740 = vsyncpa [#allocation5], 1

</llo_original>
